<compile_context>
chip_gen: v7x
topology: tpu7x:2x2x1
jax: 0.10.0
libtpu: 0.0.40
codegen_flags: <defaults>
</compile_context>

<pallas_src>
import functools
import math

import jax
import jax.numpy as jnp
import numpy as np
from jax.experimental import pallas as pl
from jax.experimental.pallas import tpu as pltpu


# ----------------------------------------------------------------------------
# Tiled linear (x @ W + b) kernel — pipelined over (M, N, K), bf16 in, f32 acc
# ----------------------------------------------------------------------------

def _linear_kernel(x_ref, w_ref, b_ref, o_ref, acc_ref):
    @pl.when(pl.program_id(2) == 0)
    def _init():
        acc_ref[...] = jnp.zeros_like(acc_ref)

    acc_ref[...] += jnp.dot(x_ref[...], w_ref[...],
                            preferred_element_type=jnp.float32)

    @pl.when(pl.program_id(2) == pl.num_programs(2) - 1)
    def _finalize():
        o_ref[...] = (acc_ref[...] + b_ref[...].astype(jnp.float32)
                      ).astype(o_ref.dtype)


def pallas_linear(x, w, b, *, out_dtype=None, tm=512, tn=512, tk=512):
    """x: (M, K), w: (K, N) (already x@W layout vs torch), b: (N,) f32."""
    M, K = x.shape
    N = w.shape[1]
    out_dtype = out_dtype or x.dtype
    # Fall back to full extents when a dim does not tile evenly (tiny test shapes).
    tm = tm if M % tm == 0 else M
    tn = tn if N % tn == 0 else N
    tk = tk if K % tk == 0 else K
    b2 = b.reshape(1, N).astype(jnp.float32)     # keep the bias add in f32
    return pl.pallas_call(
        _linear_kernel,
        out_shape=jax.ShapeDtypeStruct((M, N), out_dtype),
        grid_spec=pltpu.PrefetchScalarGridSpec(
            num_scalar_prefetch=0,
            grid=(M // tm, N // tn, K // tk),
            in_specs=[
                pl.BlockSpec((tm, tk), lambda i, j, k: (i, k)),
                pl.BlockSpec((tk, tn), lambda i, j, k: (k, j)),
                pl.BlockSpec((1, tn), lambda i, j, k: (0, j)),
            ],
            out_specs=pl.BlockSpec((tm, tn), lambda i, j, k: (i, j)),
            scratch_shapes=[pltpu.VMEM((tm, tn), jnp.float32)],
        ),
        compiler_params=pltpu.CompilerParams(
            dimension_semantics=("parallel", "parallel", "arbitrary")),
    )(x, w, b2)


# ----------------------------------------------------------------------------
# Relative attention: flash-style online softmax, all heads per grid step,
# tiled over query AND key axes (key axis last, accumulators in VMEM scratch).
# ----------------------------------------------------------------------------

_NEG_FLOOR = -1e30   # finite floor so fully-masked rows never produce NaN


def _rel_attn_kernel(quv_ref, kp_ref, v_ref, mask_ref, o_ref,
                     m_ref, l_ref, acc_ref, *, num_heads, d_k):
    # quv : (1, tq , 2D) bf16 — per head h: [qu_h | qv_h]; linear bias,
    #       pos_bias_u/v and 1/sqrt(d_k) already folded in.
    # kp  : (1, tkv, 2D) bf16 — per head h: [k_h | p_h].
    # v   : (1, tkv,  D) bf16
    # mask: (1, tq, tkv) int32, 0 => masked out
    # scratch (persist across the kv grid axis):
    #   m_ref  : (H, tq, 1) f32 running max
    #   l_ref  : (H, tq, 1) f32 running denom
    #   acc_ref: (H, tq, d_k) f32 running numerator
    kv_i = pl.program_id(2)

    @pl.when(kv_i == 0)
    def _init():
        m_ref[...] = jnp.full(m_ref.shape, _NEG_FLOOR, jnp.float32)
        l_ref[...] = jnp.zeros_like(l_ref)
        acc_ref[...] = jnp.zeros_like(acc_ref)

    quv = quv_ref[0]
    kp = kp_ref[0]
    v = v_ref[0]
    neg_mask = mask_ref[0] == 0                    # (tq, tkv), shared by all heads

    # Static unroll over heads: per-head temporaries are (tq, tkv), consumed before
    # the next head starts.  TODO(synk): for very large H switch to lax.fori_loop
    # with pl.ds slices to hard-bound vreg live ranges.
    for h in range(num_heads):
        lo2, hi2 = 2 * h * d_k, 2 * (h + 1) * d_k
        lo, hi = h * d_k, (h + 1) * d_k

        # One MXU matmul with a 2*d_k-deep contraction == qu_h@k_hT + qv_h@p_hT,
        # already scaled by 1/sqrt(d_k).  No transpose is materialized.
        s = jax.lax.dot_general(
            quv[:, lo2:hi2], kp[:, lo2:hi2],
            dimension_numbers=(((1,), (1,)), ((), ())),
            preferred_element_type=jnp.float32)     # (tq, tkv) f32

        s = jnp.where(neg_mask, -jnp.inf, s)        # exp(-inf)=0 zeroes masked cols

        m_prev = m_ref[h]                           # (tq, 1)
        m_new = jnp.maximum(m_prev, jnp.max(s, axis=-1, keepdims=True))
        # m_prev >= _NEG_FLOOR always, so m_new is finite even for all-masked rows.
        alpha = jnp.exp(m_prev - m_new)
        p = jnp.exp(s - m_new)
        l_ref[h] = alpha * l_ref[h] + jnp.sum(p, axis=-1, keepdims=True)
        acc_ref[h] = alpha * acc_ref[h] + jnp.dot(
            p.astype(v.dtype), v[:, lo:hi], preferred_element_type=jnp.float32)
        m_ref[h] = m_new

    @pl.when(kv_i == pl.num_programs(2) - 1)
    def _finalize():
        # Runs once per (b, q) block (amortized over the whole kv axis), so the
        # per-head d_k-lane stores here are negligible; the output BlockSpec itself
        # is lane-dense (last dim D >= 128 for production shapes).
        for h in range(num_heads):
            lo, hi = h * d_k, (h + 1) * d_k
            # Clamp the denom: fully-masked rows have l == 0 -> output exactly 0,
            # matching the reference's post-softmax masked_fill(0).
            inv_l = pl.reciprocal(jnp.maximum(l_ref[h], 1e-30), approx=True)
            o_ref[0, :, lo:hi] = (acc_ref[h] * inv_l).astype(o_ref.dtype)


def pallas_rel_attention(quv, kp, v, mask, num_heads, d_k):
    """quv: (B,T,2D) bf16, kp: (B,T,2D) bf16, v: (B,T,D) bf16, mask: (B,T,T) int."""
    B, T, _ = quv.shape
    D = num_heads * d_k

    def _pick(t, prefs):
        for cand in prefs:
            if t % cand == 0:
                return cand
        return t

    # tq=256 fills the 256-wide v6e/v7x MXU; (use 128 on v5e if tuning per-chip).
    tq = _pick(T, (256, 128))
    tkv = _pick(T, (512, 256, 128))
    nq, nk = T // tq, T // tkv

    kernel = functools.partial(_rel_attn_kernel, num_heads=num_heads, d_k=d_k)
    return pl.pallas_call(
        kernel,
        out_shape=jax.ShapeDtypeStruct((B, T, D), quv.dtype),
        grid=(B, nq, nk),
        in_specs=[
            pl.BlockSpec((1, tq, 2 * D), lambda b, q, k: (b, q, 0)),
            pl.BlockSpec((1, tkv, 2 * D), lambda b, q, k: (b, k, 0)),
            pl.BlockSpec((1, tkv, D), lambda b, q, k: (b, k, 0)),
            pl.BlockSpec((1, tq, tkv), lambda b, q, k: (b, q, k)),
        ],
        out_specs=pl.BlockSpec((1, tq, D), lambda b, q, k: (b, q, 0)),
        scratch_shapes=[
            pltpu.VMEM((num_heads, tq, 1), jnp.float32),     # running max
            pltpu.VMEM((num_heads, tq, 1), jnp.float32),     # running denom
            pltpu.VMEM((num_heads, tq, d_k), jnp.float32),   # running numerator
        ],
        compiler_params=pltpu.CompilerParams(
            dimension_semantics=("parallel", "parallel", "arbitrary")),
    )(quv, kp, v, mask)


# ----------------------------------------------------------------------------
# Module forward (glue in plain JAX, hot path in Pallas)
# ----------------------------------------------------------------------------

def rel_mhsa_forward(params, query, key, value, inputs_attn_mask, pos_embed,
                     num_heads):
    B, T, D = query.shape
    d_k = D // num_heads
    out_dtype = query.dtype
    cdt = jnp.bfloat16                              # MXU compute / activation dtype

    q_in = query.reshape(B * T, D).astype(cdt)
    k_in = key.reshape(B * T, D).astype(cdt)
    v_in = value.reshape(B * T, D).astype(cdt)
    p_in = pos_embed.reshape(B * T, D).astype(cdt)

    # ---- q projection fused with pos_bias_u/v and the 1/sqrt(d_k) scale ----
    # (weight prep is tiny, (D, 2D); in practice it would be precomputed once.
    #  For T not >> D one could instead project q once and add the biases in-kernel.)
    inv = 1.0 / math.sqrt(d_k)
    wq3 = params["wq"].reshape(D, num_heads, d_k)
    w_quv = (jnp.concatenate([wq3, wq3], axis=-1) * inv).reshape(D, 2 * D).astype(cdt)
    bq2 = params["bq"].reshape(num_heads, d_k)
    b_quv = (jnp.concatenate([bq2 + params["pos_bias_u"],
                              bq2 + params["pos_bias_v"]], axis=-1)
             * inv).reshape(2 * D).astype(jnp.float32)

    quv = pallas_linear(q_in, w_quv, b_quv).reshape(B, T, 2 * D)
    k = pallas_linear(k_in, params["wk"].astype(cdt), params["bk"]).reshape(B, T, D)
    v = pallas_linear(v_in, params["wv"].astype(cdt), params["bv"]).reshape(B, T, D)
    p = pallas_linear(p_in, params["wpos"].astype(cdt),
                      jnp.zeros((D,), jnp.float32)).reshape(B, T, D)   # no bias

    # Projection-time layout: interleave k|p per head so the attention kernel does a
    # single 2*d_k-deep contraction per head (no in-kernel concat / transpose).
    k4 = k.reshape(B, T, num_heads, d_k)
    p4 = p.reshape(B, T, num_heads, d_k)
    v4 = v.reshape(B, T, num_heads, d_k)
    kp = jnp.concatenate([k4, p4], axis=-1).reshape(B, T, 2 * D)       # bf16
    # TODO(synk): fuse this concat (and the cache transpose below) into the k/p
    #             projection kernel to save one HBM pass; done in XLA (bf16) here.

    # new_cache = cat(k, v) along the last dim, shape (B, H, T, 2*d_k)
    new_cache = jnp.concatenate([k4, v4], axis=-1).transpose(0, 2, 1, 3).astype(out_dtype)

    # Mask streamed as-is (no int8 cast pass).  TODO(synk): for causal / length-only
    # masks, build the mask in-kernel from prefetch scalars instead of O(B*T^2) HBM.
    ctx = pallas_rel_attention(quv, kp, v, inputs_attn_mask, num_heads, d_k)  # bf16

    out = pallas_linear(ctx.reshape(B * T, D), params["wout"].astype(cdt),
                        params["bout"], out_dtype=out_dtype)
    return out.reshape(B, T, D), new_cache


# ----------------------------------------------------------------------------
# Pure-JAX reference (torch semantics, f32, for verification)
# ----------------------------------------------------------------------------

def rel_mhsa_reference(params, query, key, value, inputs_attn_mask, pos_embed,
                       num_heads):
    B, T, D = query.shape
    d_k = D // num_heads
    q = (query @ params["wq"] + params["bq"]).reshape(B, T, num_heads, d_k)
    k = (key @ params["wk"] + params["bk"]).reshape(B, T, num_heads, d_k)
    v = (value @ params["wv"] + params["bv"]).reshape(B, T, num_heads, d_k)
    p = (pos_embed @ params["wpos"]).reshape(B, T, num_heads, d_k)
    k = k.transpose(0, 2, 1, 3)
    v = v.transpose(0, 2, 1, 3)
    p = p.transpose(0, 2, 1, 3)
    new_cache = jnp.concatenate([k, v], axis=-1)
    qu = (q + params["pos_bias_u"]).transpose(0, 2, 1, 3)
    qv = (q + params["pos_bias_v"]).transpose(0, 2, 1, 3)
    ac = jnp.einsum("bhqd,bhkd->bhqk", qu, k)
    bd = jnp.einsum("bhqd,bhkd->bhqk", qv, p)
    scores = (ac + bd) / math.sqrt(d_k)
    mask0 = (inputs_attn_mask[:, None, :, :] == 0)
    scores = jnp.where(mask0, -jnp.inf, scores)
    attn = jax.nn.softmax(scores, axis=-1)
    attn = jnp.where(mask0, 0.0, attn)
    ctx = jnp.einsum("bhqk,bhkd->bhqd", attn, v)
    ctx = ctx.transpose(0, 2, 1, 3).reshape(B, T, D)
    out = ctx @ params["wout"] + params["bout"]
    return out, new_cache


# ----------------------------------------------------------------------------
# Deterministic parameter init
# ----------------------------------------------------------------------------

def init_params(key, encoder_dim, num_heads, dtype=jnp.float32):
    d_k = encoder_dim // num_heads
    keys = jax.random.split(key, 12)

    def xavier(k, shape):
        fan_in, fan_out = shape[0], shape[-1]
        limit = math.sqrt(6.0 / (fan_in + fan_out))
        return jax.random.uniform(k, shape, dtype, -limit, limit)

    return {
        # weights stored as (D_in, D_out) so forward is x @ W
        "wq": xavier(keys[0], (encoder_dim, encoder_dim)),
        "bq": jax.random.normal(keys[1], (encoder_dim,), dtype) * 0.02,
        "wk": xavier(keys[2], (encoder_dim, encoder_dim)),
        "bk": jax.random.normal(keys[3], (encoder_dim,), dtype) * 0.02,
        "wv": xavier(keys[4], (encoder_dim, encoder_dim)),
        "bv": jax.random.normal(keys[5], (encoder_dim,), dtype) * 0.02,
        "wpos": xavier(keys[6], (encoder_dim, encoder_dim)),   # no bias
        "wout": xavier(keys[7], (encoder_dim, encoder_dim)),
        "bout": jax.random.normal(keys[8], (encoder_dim,), dtype) * 0.02,
        "pos_bias_u": xavier(keys[9], (num_heads, d_k)),
        "pos_bias_v": xavier(keys[10], (num_heads, d_k)),
    }


# ----------------------------------------------------------------------------
# Main
# ----------------------------------------------------------------------------

if __name__ == "__main__":
    B, T, D, H = 2, 8, 32, 4  # batch, seq, encoder_dim, num_heads (d_k = 8)

    root = jax.random.PRNGKey(0)
    k_params, k_q, k_k, k_v, k_p = jax.random.split(root, 5)

    params = init_params(k_params, D, H)
    query = jax.random.normal(k_q, (B, T, D), jnp.float32)
    key_in = jax.random.normal(k_k, (B, T, D), jnp.float32)
    value = jax.random.normal(k_v, (B, T, D), jnp.float32)
    pos_embed = jax.random.normal(k_p, (B, T, D), jnp.float32)

    # Causal attention mask, (B, T, T); nonzero => attend, 0 => masked.
    causal = jnp.tril(jnp.ones((T, T), jnp.int32))
    attn_mask = jnp.stack([causal, causal], axis=0)
    # Exercise the fully-masked-row path (padding-like) on batch 1.
    attn_mask = attn_mask.at[1, T - 2:, :].set(0)

    out, new_cache = rel_mhsa_forward(params, query, key_in, value, attn_mask,
                                      pos_embed, H)
    out = jax.block_until_ready(out)
    new_cache = jax.block_until_ready(new_cache)

    ref_out, ref_cache = rel_mhsa_reference(params, query, key_in, value,
                                            attn_mask, pos_embed, H)

    # bf16 MXU operands + approx reciprocal vs f32 reference => loosened tolerance.
    np.testing.assert_allclose(np.asarray(out, dtype=np.float32),
                               np.asarray(ref_out), rtol=5e-2, atol=5e-2)
    np.testing.assert_allclose(np.asarray(new_cache, dtype=np.float32),
                               np.asarray(ref_cache), rtol=2e-2, atol=2e-2)
    assert out.shape == (B, T, D)
    assert new_cache.shape == (B, H, T, 2 * (D // H))
    assert not np.any(np.isnan(np.asarray(out, dtype=np.float32)))

    print("KERNEL_OK")
</pallas_src>

<mosaic_0001>
module attributes {stable_mosaic.version = 11 : i64} {
  func.func @_linear_kernel(%arg0: i32, %arg1: i32, %arg2: i32, %arg3: memref<16x32xbf16, #tpu.memory_space<vmem>>, %arg4: memref<32x64xbf16, #tpu.memory_space<vmem>>, %arg5: memref<1x64xf32, #tpu.memory_space<vmem>>, %arg6: memref<16x64xbf16, #tpu.memory_space<vmem>>, %arg7: memref<16x64xf32, #tpu.memory_space<vmem>>) attributes {dimension_semantics = [#tpu.dimension_semantics<parallel>, #tpu.dimension_semantics<parallel>, #tpu.dimension_semantics<arbitrary>], iteration_bounds = array<i64: 1, 1, 1>, scalar_prefetch = 0 : i64, scratch_operands = 1 : i64, tpu.core_type = #tpu.core_type<tc>, window_params = [{transform_indices = @transform_0, window_bounds = array<i64: 16, 32>}, {transform_indices = @transform_1, window_bounds = array<i64: 32, 64>}, {transform_indices = @transform_2, window_bounds = array<i64: 1, 64>}, {transform_indices = @transform_3, window_bounds = array<i64: 16, 64>}]} {
    %c0_i32 = arith.constant 0 : i32
    %0 = arith.cmpi eq, %arg2, %c0_i32 : i32
    %1 = arith.extui %0 : i1 to i32
    %c0_i32_0 = arith.constant 0 : i32
    %2 = arith.cmpi ne, %1, %c0_i32_0 : i32
    scf.if %2 {
      %cst_10 = arith.constant 0.000000e+00 : f32
      %12 = vector.broadcast %cst_10 : f32 to vector<16x64xf32>
      %c0_11 = arith.constant 0 : index
      %c0_12 = arith.constant 0 : index
      %13 = vector.load %arg7[%c0_11, %c0_12] : memref<16x64xf32, #tpu.memory_space<vmem>>, vector<16x64xf32>
      tpu.vector_store %arg7[%c0_11, %c0_12], %12 {strides = array<i32>} : memref<16x64xf32, #tpu.memory_space<vmem>>, vector<16x64xf32>,
    } else {
    }
    %c0 = arith.constant 0 : index
    %c0_1 = arith.constant 0 : index
    %3 = vector.load %arg7[%c0, %c0_1] : memref<16x64xf32, #tpu.memory_space<vmem>>, vector<16x64xf32>
    %c0_2 = arith.constant 0 : index
    %c0_3 = arith.constant 0 : index
    %4 = vector.load %arg3[%c0_2, %c0_3] : memref<16x32xbf16, #tpu.memory_space<vmem>>, vector<16x32xbf16>
    %c0_4 = arith.constant 0 : index
    %c0_5 = arith.constant 0 : index
    %5 = vector.load %arg4[%c0_4, %c0_5] : memref<32x64xbf16, #tpu.memory_space<vmem>>, vector<32x64xbf16>
    %cst = arith.constant dense<0.000000e+00> : vector<16x64xf32>
    %6 = tpu.matmul %4, %5, %cst {dimension_numbers = #tpu.dot_dimension_numbers<[1], [0], [0], [1], [0, 0, 1, 1], [], []>} : vector<16x32xbf16>, vector<32x64xbf16>, vector<16x64xf32> -> vector<16x64xf32>
    %7 = arith.addf %3, %6 : vector<16x64xf32>
    %c0_6 = arith.constant 0 : index
    %c0_7 = arith.constant 0 : index
    %8 = vector.load %arg7[%c0_6, %c0_7] : memref<16x64xf32, #tpu.memory_space<vmem>>, vector<16x64xf32>
    tpu.vector_store %arg7[%c0_6, %c0_7], %7 {strides = array<i32>} : memref<16x64xf32, #tpu.memory_space<vmem>>, vector<16x64xf32>,
    %c0_i32_8 = arith.constant 0 : i32
    %9 = arith.cmpi eq, %arg2, %c0_i32_8 : i32
    %10 = arith.extui %9 : i1 to i32
    %c0_i32_9 = arith.constant 0 : i32
    %11 = arith.cmpi ne, %10, %c0_i32_9 : i32
    scf.if %11 {
      %c0_10 = arith.constant 0 : index
      %c0_11 = arith.constant 0 : index
      %12 = vector.load %arg7[%c0_10, %c0_11] : memref<16x64xf32, #tpu.memory_space<vmem>>, vector<16x64xf32>
      %c0_12 = arith.constant 0 : index
      %c0_13 = arith.constant 0 : index
      %13 = vector.load %arg5[%c0_12, %c0_13] : memref<1x64xf32, #tpu.memory_space<vmem>>, vector<1x64xf32>
      %14 = vector.broadcast %13 : vector<1x64xf32> to vector<16x64xf32>
      %15 = arith.addf %12, %14 : vector<16x64xf32>
      %16 = arith.truncf %15 : vector<16x64xf32> to vector<16x64xbf16>
      %c0_14 = arith.constant 0 : index
      %c0_15 = arith.constant 0 : index
      %17 = vector.load %arg6[%c0_14, %c0_15] : memref<16x64xbf16, #tpu.memory_space<vmem>>, vector<16x64xbf16>
      tpu.vector_store %arg6[%c0_14, %c0_15], %16 {strides = array<i32>} : memref<16x64xbf16, #tpu.memory_space<vmem>>, vector<16x64xbf16>,
    } else {
    }
    return
  }
  func.func @transform_0(%arg0: i32, %arg1: i32, %arg2: i32) -> (i32, i32) {
    %c0_i32 = arith.constant 0 : i32
    return %arg0, %arg2 : i32, i32
  }
  func.func @transform_1(%arg0: i32, %arg1: i32, %arg2: i32) -> (i32, i32) {
    %c0_i32 = arith.constant 0 : i32
    return %arg2, %arg1 : i32, i32
  }
  func.func @transform_2(%arg0: i32, %arg1: i32, %arg2: i32) -> (i32, i32) {
    %c0_i32 = arith.constant 0 : i32
    %c0_i32_0 = arith.constant 0 : i32
    return %c0_i32, %arg1 : i32, i32
  }
  func.func @transform_3(%arg0: i32, %arg1: i32, %arg2: i32) -> (i32, i32) {
    %c0_i32 = arith.constant 0 : i32
    return %arg0, %arg1 : i32, i32
  }
}

</mosaic_0001>

<llo_original>
// kernel: tpu_custom_call.1
$region0: #{tpu_custom_call.1}
  #allocation0 [shape = 'u32[]', space=smem, size = 0x4, offset = 0x4, fixed_abs, tag = 'smem constant byte address 0x4 - core index']
  #allocation1 [shape = 'u32[144,128]{1,0:T(1,128)}', space=vmem, size = 0x12000, scoped, tag = 'internal scratch']
  #allocation2 [shape = 'f32[16,64]{1,0:T(8,128)}', space=vmem, size = 0x2000, scoped, tag = 'scratch operand']
  %s0 = inlined_call_operand.hbm [shape: bf16[16,32], index: 0, kind: input, shape index: {}]
  %s1 = inlined_call_operand.hbm [shape: bf16[32,64], index: 1, kind: input, shape index: {}]
  %s2 = inlined_call_operand.vmem [shape: f32[1,64], index: 2, kind: input, shape index: {}]
  %s3 = inlined_call_operand.hbm [shape: bf16[16,64], index: 3, kind: output, shape index: {}]
  %s4 = sld [smem:[#allocation0]]
  $region38: #{tpu_custom_call.1} parent=0
    _
  %s6 = ssub.s32 1, %s4
  %s7 = scalar_select 0, %s6, %s4
  $region1: #{tpu_custom_call.1} parent=0
    #allocation3 [shape = 'u8[4096]{0}', space=vmem, size = 0x1000, scoped, tag = 'input window, operand 0, single buffered']
    #allocation4 [shape = 's32[1]{0}', space=sflag, size = 0x4, scoped, tag = 'scoped memory for tpu_custom_call.1']
    #allocation5 [shape = 's32[1]{0}', space=sflag, size = 0x4, scoped, tag = 'scoped memory for tpu_custom_call.1']
    #allocation6 [shape = 'u8[8192]{0}', space=vmem, size = 0x2000, scoped, tag = 'input window, operand 1, single buffered']
    #allocation7 [shape = 's32[1]{0}', space=sflag, size = 0x4, scoped, tag = 'scoped memory for tpu_custom_call.1']
    #allocation8 [shape = 'u8[4096]{0}', space=vmem, size = 0x1000, scoped, tag = 'output window, operand 0, single buffered']
    %8 = vsyncpa [#allocation4], 0
    %9 = vsyncpa [#allocation7], 0
    %10 = vsyncpa [#allocation5], 0
    // Predicated region
    $region2: #{tpu_custom_call.1} parent=1 // pred_check
      _
    $region3: #{tpu_custom_call.1} parent=1 // pred_check_branch
      %12 = sbr.rel (0) target = $region5
    $region4: #{tpu_custom_call.1} parent=1 // pred_region
      %s14 = ssub.s32 128, 128
      %15 = vsyncadd [#allocation4], %s14
      %s16 = sshll.u32 [#allocation3], 4
      %s17 = int_to_ptr.vmem [resolvable:$true] %s16
      %22 = dma.hbm_to_vmem [thread:$0]  %s0, 128, %s17, [#allocation4], 64, 64, 4
    $region5: #{tpu_custom_call.1} parent=1 // pred_fallthru
      _
    // Predicated region
    $region6: #{tpu_custom_call.1} parent=1 // pred_check
      _
    $region7: #{tpu_custom_call.1} parent=1 // pred_check_branch
      %24 = sbr.rel (0) target = $region9
    $region8: #{tpu_custom_call.1} parent=1 // pred_region
      %s26 = ssub.s32 256, 256
      %27 = vsyncadd [#allocation7], %s26
      %s28 = sshll.u32 [#allocation6], 4
      %s29 = int_to_ptr.vmem [resolvable:$true] %s28
      %34 = dma.hbm_to_vmem [thread:$0]  %s1, 256, %s29, [#allocation7], 64, 64, 4
    $region9: #{tpu_custom_call.1} parent=1 // pred_fallthru
      _
    // Predicated region
    $region10: #{tpu_custom_call.1} parent=1 // pred_check
      _
    $region11: #{tpu_custom_call.1} parent=1 // pred_check_branch
      %36 = sbr.rel (0) target = $region13
    $region12: #{tpu_custom_call.1} parent=1 // pred_region
      _
    $region13: #{tpu_custom_call.1} parent=1 // pred_fallthru
      _
    // Predicated region
    $region14: #{tpu_custom_call.1} parent=1 // pred_check
      _
    $region15: #{tpu_custom_call.1} parent=1 // pred_check_branch
      %38 = sbr.rel (0) target = $region17
    $region16: #{tpu_custom_call.1} parent=1 // pred_region
      %39 = dma.done [#allocation4], 128
    $region17: #{tpu_custom_call.1} parent=1 // pred_fallthru
      _
    // Predicated region
    $region18: #{tpu_custom_call.1} parent=1 // pred_check
      _
    $region19: #{tpu_custom_call.1} parent=1 // pred_check_branch
      %41 = sbr.rel (0) target = $region21
    $region20: #{tpu_custom_call.1} parent=1 // pred_region
      %42 = dma.done [#allocation7], 256
    $region21: #{tpu_custom_call.1} parent=1 // pred_fallthru
      _
    %p44 = scmp.eq.s32.totalorder 0, 0
    // Predicated region
    $region22: #{tpu_custom_call.1} parent=1 // pred_check
      %p45 = pneg %p44
    $region23: #{tpu_custom_call.1} parent=1 // pred_check_branch
      %47 = sbr.rel (%p45) target = $region25
    $region24: #{tpu_custom_call.1} parent=1 // pred_region
      %vm48 = vcmask 523264
      %49 = vst.msk [vmem:[#allocation2] sm:$0xff] %vm48, 0.0
      %50 = vst.msk [vmem:[#allocation2 + $0x8] sm:$0xff] %vm48, 0.0
    $region25: #{tpu_custom_call.1} parent=1 // pred_fallthru
      _
    %v51 = vld [vmem:[#allocation2] sm:$0xff]
    %v52 = vld [vmem:[#allocation2 + $0x8] sm:$0xff]
    %v53 = vld [vmem:[#allocation3] sm:$0xf]
    %v54 = vld [vmem:[#allocation3 + $0x4] sm:$0xf]
    %v55 = vld [vmem:[#allocation6] sm:$0xf]
    %v56 = vld [vmem:[#allocation6 + $0x4] sm:$0xf]
    %v57 = vld [vmem:[#allocation6 + $0x8] sm:$0xf]
    %v58 = vld [vmem:[#allocation6 + $0xc] sm:$0xf]
    %v61 = vunpack.c.l.b16 %v53
    %v62 = vunpack.c.l.b16 %v54
    %v63 = vpack.c.b16 %v62, %v61
    %v68 = vunpack.c.l.b16 %v55
    %v69 = vunpack.c.l.b16 %v56
    %v70 = vunpack.c.l.b16 %v57
    %v71 = vunpack.c.l.b16 %v58
    %v72 = vpack.c.b16 %v69, %v68
    %v73 = vpack.c.b16 %v71, %v70
    %vm76 = vcmask 261120
    %v78 = vsel %vm76, %v63, 0
    %80 = vmatprep.subr.bf16.mxu0 0
    %81 = vmatpush1.bf16.msra.mxu0 %v72
    %82 = vmatprep.subr.bf16.mxu0 0
    %83 = vmatpush1.bf16.msra.mxu0 %v73
    %84 = vmatprep.subr.bf16.mxu0 0
    %85 = vmatpush1.bf16.msra.mxu0 0
    %86 = vmatprep.subr.bf16.mxu0 0
    %87 = vmatpush1.bf16.msra.mxu0 0
    %88 = vmatprep.subr.bf16.mxu0 0
    %89 = vmatpush1.bf16.msra.mxu0 0
    %90 = vmatprep.subr.bf16.mxu0 0
    %91 = vmatpush1.bf16.msra.mxu0 0
    %92 = vmatprep.subr.bf16.mxu0 0
    %93 = vmatpush1.bf16.msra.mxu0 0
    %94 = vmatprep.subr.bf16.mxu0 0
    %95 = vmatpush1.bf16.msra.mxu0 0
    %96 = vmatprep.subr.bf16.mxu0 0
    %97 = vmatpush1.bf16.msra.mxu0 0
    %98 = vmatprep.subr.bf16.mxu0 0
    %99 = vmatpush1.bf16.msra.mxu0 0
    %100 = vmatprep.subr.bf16.mxu0 0
    %101 = vmatpush1.bf16.msra.mxu0 0
    %102 = vmatprep.subr.bf16.mxu0 0
    %103 = vmatpush1.bf16.msra.mxu0 0
    %104 = vmatprep.subr.bf16.mxu0 0
    %105 = vmatpush1.bf16.msra.mxu0 0
    %106 = vmatprep.subr.bf16.mxu0 0
    %107 = vmatpush1.bf16.msra.mxu0 0
    %108 = vmatprep.subr.bf16.mxu0 0
    %109 = vmatpush1.bf16.msra.mxu0 0
    %110 = vmatprep.subr.bf16.mxu0 0
    %111 = vmatpush1.bf16.msra.mxu0 0
    %112 = vmatprep.mubr.bf16.mxu0 0
    %113 = vmatmul.mubr.bf16.gmra.mrb[0].mxu0 %v78
    %v114 = vpop.f32.mrb[0].mxu0
    %v115 = vadd.f32 0.0, %v114
    %v116 = vpop.f32.mrb[0].mxu0
    %v117 = vpop.f32.mrb[0].mxu0
    %v118 = vadd.f32 0.0, %v117
    %v119 = vpop.f32.mrb[0].mxu0
    %120 = vdwg.mxu0
    %v121 = vadd.f32 %v51, %v115
    %v122 = vadd.f32 %v52, %v118
    %vm123 = vcmask 523264
    %124 = vst.msk [vmem:[#allocation2] sm:$0xff] %vm123, %v121
    %125 = vst.msk [vmem:[#allocation2 + $0x8] sm:$0xff] %vm123, %v122
    // Predicated region
    $region26: #{tpu_custom_call.1} parent=1 // pred_check
      %p126 = pneg %p44
    $region27: #{tpu_custom_call.1} parent=1 // pred_check_branch
      %128 = sbr.rel (%p126) target = $region29
    $region28: #{tpu_custom_call.1} parent=1 // pred_region
      %v129 = vld [vmem:[#allocation2] sm:$0xff]
      %v130 = vld [vmem:[#allocation2 + $0x8] sm:$0xff]
      %v131 = vld [vmem:[%s2] sm:$0x1]
      %v133 = vlaneseq
      %v134 = vshrl.u32 %v133, 7
      %v135 = vsub.s32 0, %v134
      %v136 = vrot.slane %v131, %v135
      %v138 = vadd.f32 %v129, %v136
      %v139 = vadd.f32 %v130, %v136
      %v140 = vpack.c.bf16 %v139, %v138
      %v142 = vunpack.c.l.b16 %v140
      %v143 = vunpack.c.h.b16 %v140
      %v144 = vpack.c.b16 %v142, %v142
      %v145 = vpack.c.b16 %v143, %v143
      %vm148 = vcmask 519168
      %149 = vst.msk [vmem:[#allocation8] sm:$0xf] %vm148, %v144
      %150 = vst.msk [vmem:[#allocation8 + $0x4] sm:$0xf] %vm148, %v145
    $region29: #{tpu_custom_call.1} parent=1 // pred_fallthru
      _
    // Predicated region
    $region30: #{tpu_custom_call.1} parent=1 // pred_check
      _
    $region31: #{tpu_custom_call.1} parent=1 // pred_check_branch
      %152 = sbr.rel (0) target = $region33
    $region32: #{tpu_custom_call.1} parent=1 // pred_region
      %s154 = ssub.s32 128, 128
      %155 = vsyncadd [#allocation5], %s154
      %s156 = sshll.u32 [#allocation8], 4
      %s157 = int_to_ptr.vmem [resolvable:$true] %s156
      %162 = dma.vmem_to_hbm [thread:$0]  %s157, 128, %s3, [#allocation5], 64, 64, 4
    $region33: #{tpu_custom_call.1} parent=1 // pred_fallthru
      _
    // Predicated region
    $region34: #{tpu_custom_call.1} parent=1 // pred_check
      _
    $region35: #{tpu_custom_call.1} parent=1 // pred_check_branch
      %164 = sbr.rel (0) target = $region37
    $region36: #{tpu_custom_call.1} parent=1 // pred_region
      %165 = dma.done [#allocation5], 128
    $region37: #{tpu_custom_call.1} parent=1 // pred_fallthru
      _
    %166 = vsyncpa [#allocation4], 1
    %167 = vsyncpa [#allocation7], 1
    %168 = vsyncpa [#allocation5], 1

</llo_original>
